<compile_context>
chip_gen: v7x
topology: tpu7x:2x2x1
jax: 0.10.0
libtpu: 0.0.40
codegen_flags: <defaults>
</compile_context>

<pallas_src>
import math

import jax
import jax.numpy as jnp
from jax.experimental import pallas as pl
from jax.experimental.pallas import tpu as pltpu

_LANE = 128


def _round_up(x, m):
    return ((x + m - 1) // m) * m


def _cdiv(a, b):
    return -(-a // b)


def _sublane(dtype):
    return max(8, 32 // jnp.dtype(dtype).itemsize)


def _default_row_tile():
    """Per-generation row-tile default (mem-bound: big tiles amortize the
    ~0.35us per-grid-step overhead)."""
    try:
        kind = jax.devices()[0].device_kind.lower()
    except Exception:
        return 2048
    if "v5 lite" in kind or "v5lite" in kind or "v5e" in kind:
        return 1024
    if "v6" in kind or "trillium" in kind:
        return 2048
    if "v7" in kind:
        return 4096
    return 2048


def _vmem_cap_bytes():
    """Cap the requested scoped VMEM at 3/4 of physical per-core VMEM."""
    try:
        phys = int(pltpu.get_tpu_info().vmem_capacity_bytes)
    except Exception:
        phys = 64 * 1024 * 1024  # conservative (v7x-sized) if unknown
    return (phys * 3) // 4


def _glu_kernel(x_ref, w_ref, b_ref, o_ref):
    """out = sigmoid(x @ W1 + b1) * (x @ W2 + b2) with W = [W1 | W2]."""
    half = w_ref.shape[-1] // 2
    h_out = o_ref.shape[-1]
    x = x_ref[...]
    if x.dtype != w_ref.dtype:
        x = x.astype(w_ref.dtype)  # in-vreg cast (e.g. bf16 MXU path)
    # Single fused MXU matmul, f32 accumulation.
    y = jnp.dot(x, w_ref[...], preferred_element_type=jnp.float32)
    y = y + b_ref[...]                      # (1, 2*half) broadcast, f32
    gate = jax.nn.sigmoid(y[:, :half])      # EUP transcendental, f32
    val = y[:, half:]
    prod = gate * val
    o_ref[...] = prod[:, :h_out].astype(o_ref.dtype)


def fuse_glu_params(w1, b1, w2, b2, *, mxu_dtype=None):
    """Fuse fc1/fc2 params into one (K, 2*Np) weight and (1, 2*Np) bias.

    Call ONCE at parameter init (or cache) -- rebuilding per forward call
    would add an extra HBM pass over the weights every step.

    Weights are expected as (in_features, out_features), i.e. already
    transposed relative to nn.Linear storage, so the kernel computes x @ W.

    Returns (wc, bc, pack):
      * 128 % H == 0: block-diagonal layout, pack = 128 // H logical rows per
        128-lane physical row; wc is (128, 256), lane-dense everywhere.
      * otherwise: pack = 1, wc is (H, 2*Np) with Np = round_up(H, 128);
        W1 at cols [:H], W2 at cols [Np:Np+H].
    """
    H = w1.shape[0]
    w_dtype = jnp.dtype(mxu_dtype) if mxu_dtype is not None else jnp.dtype(w1.dtype)

    if _LANE % H == 0:
        pack = _LANE // H
        kdim = _LANE
        half = _LANE
        wc = jnp.zeros((kdim, 2 * half), dtype=w_dtype)
        w1c = w1.astype(w_dtype)
        w2c = w2.astype(w_dtype)
        for i in range(pack):
            r = i * H
            wc = wc.at[r:r + H, r:r + H].set(w1c)
            wc = wc.at[r:r + H, half + r:half + r + H].set(w2c)
        bc = jnp.concatenate(
            [jnp.tile(b1.astype(jnp.float32), pack),
             jnp.tile(b2.astype(jnp.float32), pack)]
        ).reshape(1, 2 * half)
    else:
        pack = 1
        half = _round_up(H, _LANE)
        wc = jnp.zeros((H, 2 * half), dtype=w_dtype)
        wc = wc.at[:, :H].set(w1.astype(w_dtype))
        wc = wc.at[:, half:half + H].set(w2.astype(w_dtype))
        bc = jnp.zeros((1, 2 * half), dtype=jnp.float32)
        bc = bc.at[0, :H].set(b1.astype(jnp.float32))
        bc = bc.at[0, half:half + H].set(b2.astype(jnp.float32))
    return wc, bc, pack


def glu_pallas_fused(x, wc, bc, pack, *, tm=None, out_dtype=None, interpret=False):
    """GLU forward using pre-fused params from fuse_glu_params.

    x : (..., H) activations (NOT copied or padded by this wrapper).
    """
    orig_shape = x.shape
    H = orig_shape[-1]
    out_dtype = jnp.dtype(out_dtype) if out_dtype is not None else x.dtype
    kdim, two_half = wc.shape
    half = two_half // 2

    x2d = x.reshape(-1, H)                  # free (contiguous)
    M = x2d.shape[0]

    pad_rows = 0
    if pack > 1:
        pad_rows = (-M) % pack
        if pad_rows:
            # Rare ragged case only: a tiny row pad so the free
            # (M, H) -> (M/pack, 128) reshape is possible.
            x2d = jnp.pad(x2d, ((0, pad_rows), (0, 0)))
        xk = x2d.reshape((M + pad_rows) // pack, kdim)   # free reshape
        hout = half                                      # lane-dense output
    else:
        xk = x2d                                         # native H, no copy
        hout = H
    Mr = xk.shape[0]

    sub = max(_sublane(xk.dtype), _sublane(out_dtype))
    tm_target = max(sub, tm if tm is not None else _default_row_tile())

    # Number of row blocks: balanced, sublane-aligned, >= 2 for sizeable
    # inputs (keeps both v7x TensorCores busy and enables DMA/compute overlap).
    nsteps = _cdiv(Mr, tm_target)
    if nsteps == 1 and Mr >= 1024:
        nsteps = 2
    if nsteps == 1:
        tm_eff = Mr                          # single block == full dim (legal)
    else:
        tm_eff = _round_up(_cdiv(Mr, nsteps), sub)
    grid_m = _cdiv(Mr, tm_eff)

    # VMEM budget from the actual footprint, with headroom, capped below
    # physical per-core VMEM.
    in_sz = jnp.dtype(xk.dtype).itemsize
    w_sz = jnp.dtype(wc.dtype).itemsize
    out_sz = jnp.dtype(out_dtype).itemsize
    cap = _vmem_cap_bytes()

    def footprint(t):
        return (2 * t * kdim * in_sz          # x tile (double buffered)
                + 2 * t * hout * out_sz       # out tile (double buffered)
                + 2 * kdim * two_half * w_sz  # resident fused weight
                + 2 * two_half * 4            # bias
                + 3 * t * two_half * 4)       # f32 matmul result + temporaries

    while footprint(tm_eff) > (cap * 4) // 5 and tm_eff > 2 * sub:
        tm_eff = max(sub, _round_up(tm_eff // 2, sub))
        grid_m = _cdiv(Mr, tm_eff)
    vmem_limit = int(min(cap, max(32 * 1024 * 1024, (footprint(tm_eff) * 3) // 2)))

    out = pl.pallas_call(
        _glu_kernel,
        out_shape=jax.ShapeDtypeStruct((Mr, hout), out_dtype),
        grid_spec=pltpu.PrefetchScalarGridSpec(
            num_scalar_prefetch=0,
            grid=(grid_m,),
            in_specs=[
                pl.BlockSpec((tm_eff, kdim), lambda i: (i, 0)),    # x row tile
                pl.BlockSpec((kdim, two_half), lambda i: (0, 0)),  # [W1|W2]
                pl.BlockSpec((1, two_half), lambda i: (0, 0)),     # [b1|b2]
            ],
            out_specs=pl.BlockSpec((tm_eff, hout), lambda i: (i, 0)),
        ),
        compiler_params=pltpu.CompilerParams(
            dimension_semantics=("parallel",),
            vmem_limit_bytes=vmem_limit,
        ),
        interpret=interpret,
    )(xk, wc, bc)

    if pack > 1:
        out = out.reshape(Mr * pack, H)      # free reshape
        if pad_rows:
            out = out[:M]
    return out.reshape(orig_shape)


def glu_pallas(x, w1, b1, w2, b2, *, tm=None, mxu_dtype=None, out_dtype=None):
    """Convenience one-shot wrapper.  For a real model, call fuse_glu_params
    once at init and reuse the fused operands across forward calls."""
    wc, bc, pack = fuse_glu_params(w1, b1, w2, b2, mxu_dtype=mxu_dtype)
    return glu_pallas_fused(x, wc, bc, pack, tm=tm, out_dtype=out_dtype)


def _init_linear_params(key, in_features, out_features, dtype=jnp.float32):
    """Matches nn.Linear init: uniform(-1/sqrt(in), 1/sqrt(in)).  Weight is
    returned as (in_features, out_features) so the kernel computes x @ W."""
    kw, kb = jax.random.split(key)
    bound = 1.0 / math.sqrt(in_features)
    w = jax.random.uniform(kw, (in_features, out_features), dtype,
                           minval=-bound, maxval=bound)
    b = jax.random.uniform(kb, (out_features,), dtype,
                           minval=-bound, maxval=bound)
    return w, b


if __name__ == "__main__":
    input_size = 32
    batch, seq = 2, 8

    key = jax.random.PRNGKey(0)
    kx, k1, k2 = jax.random.split(key, 3)

    x = jax.random.normal(kx, (batch, seq, input_size), dtype=jnp.float32)
    w1, b1 = _init_linear_params(k1, input_size, input_size)
    w2, b2 = _init_linear_params(k2, input_size, input_size)

    ref = jax.nn.sigmoid(x @ w1 + b1) * (x @ w2 + b2)

    # f32 path: fuse params once (as a model would at init), then run.
    wc, bc, pack = fuse_glu_params(w1, b1, w2, b2)
    out = jax.block_until_ready(glu_pallas_fused(x, wc, bc, pack))
    assert out.shape == x.shape
    assert jnp.allclose(out, ref, atol=1e-5, rtol=1e-5), "f32 mismatch vs reference"

    # bf16-MXU path (recommended on v6e/v7x): inputs rounded to bf16,
    # accumulation and elementwise math stay f32 -> looser tolerance.
    wc16, bc16, pack16 = fuse_glu_params(w1, b1, w2, b2, mxu_dtype=jnp.bfloat16)
    out16 = jax.block_until_ready(glu_pallas_fused(x, wc16, bc16, pack16))
    assert jnp.allclose(out16, ref, atol=5e-2, rtol=5e-2), "bf16 mismatch vs reference"

    print("KERNEL_OK")
</pallas_src>

<mosaic_0001>
module attributes {stable_mosaic.version = 11 : i64} {
  func.func @_glu_kernel(%arg0: i32, %arg1: memref<4x128xf32, #tpu.memory_space<vmem>>, %arg2: memref<128x256xf32, #tpu.memory_space<vmem>>, %arg3: memref<1x256xf32, #tpu.memory_space<vmem>>, %arg4: memref<4x128xf32, #tpu.memory_space<vmem>>) attributes {dimension_semantics = [#tpu.dimension_semantics<parallel>], iteration_bounds = array<i64: 1>, scalar_prefetch = 0 : i64, scratch_operands = 0 : i64, tpu.core_type = #tpu.core_type<tc>, window_params = [{transform_indices = @transform_0, window_bounds = array<i64: 4, 128>}, {pipeline_mode = #tpu.pipeline_mode<synchronous>, transform_indices = @transform_1, window_bounds = array<i64: 128, 256>}, {pipeline_mode = #tpu.pipeline_mode<synchronous>, transform_indices = @transform_2, window_bounds = array<i64: 1, 256>}, {transform_indices = @transform_3, window_bounds = array<i64: 4, 128>}]} {
    %c0 = arith.constant 0 : index
    %c0_0 = arith.constant 0 : index
    %0 = vector.load %arg1[%c0, %c0_0] : memref<4x128xf32, #tpu.memory_space<vmem>>, vector<4x128xf32>
    %c0_1 = arith.constant 0 : index
    %c0_2 = arith.constant 0 : index
    %1 = vector.load %arg2[%c0_1, %c0_2] : memref<128x256xf32, #tpu.memory_space<vmem>>, vector<128x256xf32>
    %cst = arith.constant dense<0.000000e+00> : vector<4x256xf32>
    %2 = tpu.matmul %0, %1, %cst {dimension_numbers = #tpu.dot_dimension_numbers<[1], [0], [0], [1], [0, 0, 1, 1], [], []>} : vector<4x128xf32>, vector<128x256xf32>, vector<4x256xf32> -> vector<4x256xf32>
    %c0_3 = arith.constant 0 : index
    %c0_4 = arith.constant 0 : index
    %3 = vector.load %arg3[%c0_3, %c0_4] : memref<1x256xf32, #tpu.memory_space<vmem>>, vector<1x256xf32>
    %4 = vector.broadcast %3 : vector<1x256xf32> to vector<4x256xf32>
    %5 = arith.addf %2, %4 : vector<4x256xf32>
    %6 = vector.extract_strided_slice %5 {offsets = [0, 0], sizes = [4, 128], strides = [1, 1]} : vector<4x256xf32> to vector<4x128xf32>
    %7 = arith.negf %6 : vector<4x128xf32>
    %8 = math.exp %7 : vector<4x128xf32>
    %cst_5 = arith.constant 1.000000e+00 : f32
    %9 = vector.broadcast %cst_5 : f32 to vector<4x128xf32>
    %10 = arith.addf %9, %8 : vector<4x128xf32>
    %11 = arith.divf %9, %10 : vector<4x128xf32>
    %12 = vector.extract_strided_slice %5 {offsets = [0, 128], sizes = [4, 128], strides = [1, 1]} : vector<4x256xf32> to vector<4x128xf32>
    %13 = arith.mulf %11, %12 : vector<4x128xf32>
    %c0_6 = arith.constant 0 : index
    %c0_7 = arith.constant 0 : index
    %14 = vector.load %arg4[%c0_6, %c0_7] : memref<4x128xf32, #tpu.memory_space<vmem>>, vector<4x128xf32>
    tpu.vector_store %arg4[%c0_6, %c0_7], %13 {strides = array<i32>} : memref<4x128xf32, #tpu.memory_space<vmem>>, vector<4x128xf32>,
    return
  }
  func.func @transform_0(%arg0: i32) -> (i32, i32) {
    %c0_i32 = arith.constant 0 : i32
    %c0_i32_0 = arith.constant 0 : i32
    return %arg0, %c0_i32 : i32, i32
  }
  func.func @transform_1(%arg0: i32) -> (i32, i32) {
    %c0_i32 = arith.constant 0 : i32
    %c0_i32_0 = arith.constant 0 : i32
    %c0_i32_1 = arith.constant 0 : i32
    return %c0_i32, %c0_i32_0 : i32, i32
  }
  func.func @transform_2(%arg0: i32) -> (i32, i32) {
    %c0_i32 = arith.constant 0 : i32
    %c0_i32_0 = arith.constant 0 : i32
    %c0_i32_1 = arith.constant 0 : i32
    return %c0_i32, %c0_i32_0 : i32, i32
  }
  func.func @transform_3(%arg0: i32) -> (i32, i32) {
    %c0_i32 = arith.constant 0 : i32
    %c0_i32_0 = arith.constant 0 : i32
    return %arg0, %c0_i32 : i32, i32
  }
}

</mosaic_0001>

<llo_original>
// kernel: tpu_custom_call.1
$region0: #{tpu_custom_call.1}
  #allocation0 [shape = 'u32[]', space=smem, size = 0x4, offset = 0x4, fixed_abs, tag = 'smem constant byte address 0x4 - core index']
  #allocation1 [shape = 'u32[144,128]{1,0:T(1,128)}', space=vmem, size = 0x12000, scoped, tag = 'internal scratch']
  %s0 = inlined_call_operand.hbm [shape: f32[4,128], index: 0, kind: input, shape index: {}]
  %s1 = inlined_call_operand.hbm [shape: f32[128,256], index: 1, kind: input, shape index: {}]
  %s2 = inlined_call_operand.vmem [shape: f32[1,256], index: 2, kind: input, shape index: {}]
  %s3 = inlined_call_operand.hbm [shape: f32[4,128], index: 3, kind: output, shape index: {}]
  %s4 = sld [smem:[#allocation0]]
  $region30: #{tpu_custom_call.1} parent=0
    _
  %s6 = ssub.s32 1, %s4
  %s7 = scalar_select 0, %s6, %s4
  $region1: #{tpu_custom_call.1} parent=0
    #allocation2 [shape = 'u8[2048]{0}', space=vmem, size = 0x800, scoped, tag = 'input window, operand 0, single buffered']
    #allocation3 [shape = 's32[1]{0}', space=sflag, size = 0x4, scoped, tag = 'scoped memory for tpu_custom_call.1']
    #allocation4 [shape = 's32[1]{0}', space=sflag, size = 0x4, scoped, tag = 'scoped memory for tpu_custom_call.1']
    #allocation5 [shape = 'u8[131072]{0}', space=vmem, size = 0x20000, scoped, tag = 'input window, operand 1, single buffered']
    #allocation6 [shape = 's32[1]{0}', space=sflag, size = 0x4, scoped, tag = 'scoped memory for tpu_custom_call.1']
    #allocation7 [shape = 'u8[2048]{0}', space=vmem, size = 0x800, scoped, tag = 'output window, operand 0, single buffered']
    %8 = vsyncpa [#allocation3], 0
    %9 = vsyncpa [#allocation6], 0
    %10 = vsyncpa [#allocation4], 0
    // Predicated region
    $region2: #{tpu_custom_call.1} parent=1 // pred_check
      _
    $region3: #{tpu_custom_call.1} parent=1 // pred_check_branch
      %12 = sbr.rel (0) target = $region5
    $region4: #{tpu_custom_call.1} parent=1 // pred_region
      %s14 = ssub.s32 64, 64
      %15 = vsyncadd [#allocation3], %s14
      %s17 = sshll.u32 [#allocation2], 4
      %s18 = int_to_ptr.vmem [resolvable:$true] %s17
      %20 = dma.hbm_to_vmem [thread:$0]  %s0, 64, %s18, [#allocation3]
    $region5: #{tpu_custom_call.1} parent=1 // pred_fallthru
      _
    // Predicated region
    $region6: #{tpu_custom_call.1} parent=1 // pred_check
      _
    $region7: #{tpu_custom_call.1} parent=1 // pred_check_branch
      %22 = sbr.rel (0) target = $region9
    $region8: #{tpu_custom_call.1} parent=1 // pred_region
      %s24 = ssub.s32 4096, 4096
      %25 = vsyncadd [#allocation6], %s24
      %s26 = sshll.u32 [#allocation5], 4
      %s27 = int_to_ptr.vmem [resolvable:$true] %s26
      %32 = dma.hbm_to_vmem [thread:$0]  %s1, 4096, %s27, [#allocation6], 256, 256, 16
    $region9: #{tpu_custom_call.1} parent=1 // pred_fallthru
      _
    // Predicated region
    $region10: #{tpu_custom_call.1} parent=1 // pred_check
      _
    $region11: #{tpu_custom_call.1} parent=1 // pred_check_branch
      %34 = sbr.rel (0) target = $region13
    $region12: #{tpu_custom_call.1} parent=1 // pred_region
      _
    $region13: #{tpu_custom_call.1} parent=1 // pred_fallthru
      _
    // Predicated region
    $region14: #{tpu_custom_call.1} parent=1 // pred_check
      _
    $region15: #{tpu_custom_call.1} parent=1 // pred_check_branch
      %36 = sbr.rel (0) target = $region17
    $region16: #{tpu_custom_call.1} parent=1 // pred_region
      %37 = dma.done [#allocation3], 64
    $region17: #{tpu_custom_call.1} parent=1 // pred_fallthru
      _
    // Predicated region
    $region18: #{tpu_custom_call.1} parent=1 // pred_check
      _
    $region19: #{tpu_custom_call.1} parent=1 // pred_check_branch
      %39 = sbr.rel (0) target = $region21
    $region20: #{tpu_custom_call.1} parent=1 // pred_region
      %40 = dma.done [#allocation6], 4096
    $region21: #{tpu_custom_call.1} parent=1 // pred_fallthru
      _
    %v41 = vld [vmem:[#allocation2] sm:$0xf]
    %v42 = vld [vmem:[#allocation5] sm:$0xff]
    %v43 = vld [vmem:[#allocation5 + $0x8] sm:$0xff]
    %v44 = vld [vmem:[#allocation5 + $0x10] sm:$0xff]
    %v45 = vld [vmem:[#allocation5 + $0x18] sm:$0xff]
    %v46 = vld [vmem:[#allocation5 + $0x20] sm:$0xff]
    %v47 = vld [vmem:[#allocation5 + $0x28] sm:$0xff]
    %v48 = vld [vmem:[#allocation5 + $0x30] sm:$0xff]
    %v49 = vld [vmem:[#allocation5 + $0x38] sm:$0xff]
    %v50 = vld [vmem:[#allocation5 + $0x40] sm:$0xff]
    %v51 = vld [vmem:[#allocation5 + $0x48] sm:$0xff]
    %v52 = vld [vmem:[#allocation5 + $0x50] sm:$0xff]
    %v53 = vld [vmem:[#allocation5 + $0x58] sm:$0xff]
    %v54 = vld [vmem:[#allocation5 + $0x60] sm:$0xff]
    %v55 = vld [vmem:[#allocation5 + $0x68] sm:$0xff]
    %v56 = vld [vmem:[#allocation5 + $0x70] sm:$0xff]
    %v57 = vld [vmem:[#allocation5 + $0x78] sm:$0xff]
    %v58 = vld [vmem:[#allocation5 + $0x80] sm:$0xff]
    %v59 = vld [vmem:[#allocation5 + $0x88] sm:$0xff]
    %v60 = vld [vmem:[#allocation5 + $0x90] sm:$0xff]
    %v61 = vld [vmem:[#allocation5 + $0x98] sm:$0xff]
    %v62 = vld [vmem:[#allocation5 + $0xa0] sm:$0xff]
    %v63 = vld [vmem:[#allocation5 + $0xa8] sm:$0xff]
    %v64 = vld [vmem:[#allocation5 + $0xb0] sm:$0xff]
    %v65 = vld [vmem:[#allocation5 + $0xb8] sm:$0xff]
    %v66 = vld [vmem:[#allocation5 + $0xc0] sm:$0xff]
    %v67 = vld [vmem:[#allocation5 + $0xc8] sm:$0xff]
    %v68 = vld [vmem:[#allocation5 + $0xd0] sm:$0xff]
    %v69 = vld [vmem:[#allocation5 + $0xd8] sm:$0xff]
    %v70 = vld [vmem:[#allocation5 + $0xe0] sm:$0xff]
    %v71 = vld [vmem:[#allocation5 + $0xe8] sm:$0xff]
    %v72 = vld [vmem:[#allocation5 + $0xf0] sm:$0xff]
    %v73 = vld [vmem:[#allocation5 + $0xf8] sm:$0xff]
    %v74 = vld [vmem:[%s2] sm:$0x3]
    %v76 = vlaneseq
    %v77 = vshrl.u32 %v76, 7
    %v78 = vsub.s32 0, %v77
    %v79 = vrot.slane %v74, %v78
    %v80 = vlaneseq
    %v81 = vshrl.u32 %v80, 7
    %v82 = vsub.s32 1, %v81
    %v83 = vrot.slane %v74, %v82
    %86 = vmatprep.subr.mxu0 %v43
    %87 = vmatpush1.msra.mxu0 %v42
    %88 = vmatprep.subr.mxu0 %v45
    %89 = vmatpush1.msra.mxu0 %v44
    %90 = vmatprep.subr.mxu0 %v47
    %91 = vmatpush1.msra.mxu0 %v46
    %92 = vmatprep.subr.mxu0 %v49
    %93 = vmatpush1.msra.mxu0 %v48
    %94 = vmatprep.subr.mxu0 %v51
    %95 = vmatpush1.msra.mxu0 %v50
    %96 = vmatprep.subr.mxu0 %v53
    %97 = vmatpush1.msra.mxu0 %v52
    %98 = vmatprep.subr.mxu0 %v55
    %99 = vmatpush1.msra.mxu0 %v54
    %100 = vmatprep.subr.mxu0 %v57
    %101 = vmatpush1.msra.mxu0 %v56
    %102 = vmatprep.subr.mxu0 %v59
    %103 = vmatpush1.msra.mxu0 %v58
    %104 = vmatprep.subr.mxu0 %v61
    %105 = vmatpush1.msra.mxu0 %v60
    %106 = vmatprep.subr.mxu0 %v63
    %107 = vmatpush1.msra.mxu0 %v62
    %108 = vmatprep.subr.mxu0 %v65
    %109 = vmatpush1.msra.mxu0 %v64
    %110 = vmatprep.subr.mxu0 %v67
    %111 = vmatpush1.msra.mxu0 %v66
    %112 = vmatprep.subr.mxu0 %v69
    %113 = vmatpush1.msra.mxu0 %v68
    %114 = vmatprep.subr.mxu0 %v71
    %115 = vmatpush1.msra.mxu0 %v70
    %116 = vmatprep.subr.mxu0 %v73
    %117 = vmatpush1.msra.mxu0 %v72
    %118 = vmatprep.subr.mxu0 0.0
    %119 = vmatpush1.msra.mxu0 0.0
    %120 = vmatprep.subr.mxu0 0.0
    %121 = vmatpush1.msra.mxu0 0.0
    %122 = vmatprep.subr.mxu0 0.0
    %123 = vmatpush1.msra.mxu0 0.0
    %124 = vmatprep.subr.mxu0 0.0
    %125 = vmatpush1.msra.mxu0 0.0
    %126 = vmatprep.subr.mxu0 0.0
    %127 = vmatpush1.msra.mxu0 0.0
    %128 = vmatprep.subr.mxu0 0.0
    %129 = vmatpush1.msra.mxu0 0.0
    %130 = vmatprep.subr.mxu0 0.0
    %131 = vmatpush1.msra.mxu0 0.0
    %132 = vmatprep.subr.mxu0 0.0
    %133 = vmatpush1.msra.mxu0 0.0
    %134 = vmatprep.subr.mxu0 0.0
    %135 = vmatpush1.msra.mxu0 0.0
    %136 = vmatprep.subr.mxu0 0.0
    %137 = vmatpush1.msra.mxu0 0.0
    %138 = vmatprep.subr.mxu0 0.0
    %139 = vmatpush1.msra.mxu0 0.0
    %140 = vmatprep.subr.mxu0 0.0
    %141 = vmatpush1.msra.mxu0 0.0
    %142 = vmatprep.subr.mxu0 0.0
    %143 = vmatpush1.msra.mxu0 0.0
    %144 = vmatprep.subr.mxu0 0.0
    %145 = vmatpush1.msra.mxu0 0.0
    %146 = vmatprep.subr.mxu0 0.0
    %147 = vmatpush1.msra.mxu0 0.0
    %148 = vmatprep.subr.mxu0 0.0
    %149 = vmatpush1.msra.mxu0 0.0
    %150 = vmatprep.mubr.f32.mxu0 0.0
    %151 = vmatmul.mubr.f32.gmra.mrb[0].mxu0 %v41
    %v152 = vpop.f32.mrb[0].mxu0
    %v153 = vadd.f32 %v79, %v152
    %v154 = vpop.f32.mrb[0].mxu0
    %v155 = vadd.f32 %v83, %v154
    %156 = vdwg.mxu0
    %v157 = vxor.u32 %v153, 2147483648
    %v158 = vmul.f32 %v157, 1.442695
    %v159 = vpow.pop %v158
    %v160 = vadd.f32 %v159, 1.0
    %v161 = vrcp.pop %v160
    %v162 = vmul.f32 1.0, %v161
    %v163 = vmul.f32 %v162, %v155
    %164 = vst [vmem:[#allocation7] sm:$0xf] %v163
    // Predicated region
    $region22: #{tpu_custom_call.1} parent=1 // pred_check
      _
    $region23: #{tpu_custom_call.1} parent=1 // pred_check_branch
      %166 = sbr.rel (0) target = $region25
    $region24: #{tpu_custom_call.1} parent=1 // pred_region
      %s168 = ssub.s32 64, 64
      %169 = vsyncadd [#allocation4], %s168
      %s171 = sshll.u32 [#allocation7], 4
      %s172 = int_to_ptr.vmem [resolvable:$true] %s171
      %174 = dma.vmem_to_hbm [thread:$0]  %s172, 64, %s3, [#allocation4]
    $region25: #{tpu_custom_call.1} parent=1 // pred_fallthru
      _
    // Predicated region
    $region26: #{tpu_custom_call.1} parent=1 // pred_check
      _
    $region27: #{tpu_custom_call.1} parent=1 // pred_check_branch
      %176 = sbr.rel (0) target = $region29
    $region28: #{tpu_custom_call.1} parent=1 // pred_region
      %177 = dma.done [#allocation4], 64
    $region29: #{tpu_custom_call.1} parent=1 // pred_fallthru
      _
    %178 = vsyncpa [#allocation3], 1
    %179 = vsyncpa [#allocation6], 1
    %180 = vsyncpa [#allocation4], 1

</llo_original>
